<compile_context>
chip_gen: v5e
topology: v5e:2x2
jax: 0.10.0
libtpu: 0.0.40
codegen_flags: <defaults>
</compile_context>

<pallas_src>
import math

import jax
import jax.numpy as jnp
from jax.experimental import pallas as pl
from jax.experimental.pallas import tpu as pltpu


def _round_up(x, m):
    return ((x + m - 1) // m) * m


# -----------------------------------------------------------------------------
# Fused whole-network kernel.
# -----------------------------------------------------------------------------
def _make_nsvf_kernel(n_trunk, n_post, has_color, compute_dtype):
    """Builds the kernel body for a fixed layer structure.

    Input-ref order:  x, [d],
                      (Wt, b) for each of the n_trunk trunk layers,
                      (Wt, b) last sigma layer, (Wt, b) sigma_out,
                      [Wa, Wb, b for the first post-concat layer,
                       (Wt, b) for the remaining n_post - 1 post-concat layers]
    Output-ref order: sigma, [color].
    All Wt are pre-transposed (in_p, out_p) in the compute dtype; biases are
    (1, out_p) float32.
    """

    def kernel(*refs):
        n_out = 2 if has_color else 1
        in_refs = refs[:-n_out]
        out_refs = refs[-n_out:]
        it = iter(in_refs)

        def matbias(h, wt_ref, b_ref):
            z = jnp.dot(h, wt_ref[...], preferred_element_type=jnp.float32)
            return z + b_ref[...]

        h = next(it)[...]
        d_ref = next(it) if has_color else None

        # Sigma trunk: first (n_sigma_layers - 1) ReLU layers.
        for _ in range(n_trunk):
            h = jnp.maximum(matbias(h, next(it), next(it)), 0.0).astype(compute_dtype)
        trunk = h

        # Sigma head: last sigma layer (ReLU) then sigma_out (linear).
        s = jnp.maximum(matbias(trunk, next(it), next(it)), 0.0).astype(compute_dtype)
        sigma = matbias(s, next(it), next(it))
        out_refs[0][...] = sigma.astype(out_refs[0].dtype)

        if has_color:
            # torch.cat([trunk, d]) @ W0.T  ==  trunk @ Wa.T + d @ Wb.T
            wa_ref, wb_ref, b0_ref = next(it), next(it), next(it)
            z = (jnp.dot(trunk, wa_ref[...], preferred_element_type=jnp.float32)
                 + jnp.dot(d_ref[...], wb_ref[...], preferred_element_type=jnp.float32)
                 + b0_ref[...])
            # Remaining post-concat layers; the final one (color_out) is linear.
            for _ in range(n_post - 1):
                z = jnp.maximum(z, 0.0).astype(compute_dtype)
                z = matbias(z, next(it), next(it))
            out_refs[1][...] = z.astype(out_refs[1].dtype)

    return kernel


# -----------------------------------------------------------------------------
# Wrapper: padding, weight prep, tiling, pallas_call.
# -----------------------------------------------------------------------------
def nsvf_forward(params, p, d=None, z=None, *, tm=512):
    """NSVF.forward: returns (sigma, color); color is None when d is None."""
    x = p if z is None else z
    cdt = x.dtype
    cdt_sz = jnp.dtype(cdt).itemsize
    N, in_dim = x.shape
    has_color = d is not None

    sigma_layers = list(params["sigma_layers"])
    n_trunk = len(sigma_layers) - 1

    # ---- pad + transpose all weights / biases (lane-dense, f32 biases) ------
    w_ops = []
    state = {"bytes": 0, "flops_row": 0, "max_p": _round_up(in_dim, 128)}

    def prep_w(w):
        out_d, in_d = w.shape
        ip, op = _round_up(in_d, 128), _round_up(out_d, 128)
        w_ops.append(jnp.pad(w.astype(cdt).T, ((0, ip - in_d), (0, op - out_d))))
        state["bytes"] += ip * op * cdt_sz
        state["flops_row"] += 2 * ip * op
        state["max_p"] = max(state["max_p"], op)
        return op

    def prep_b(b, op):
        w_ops.append(jnp.pad(b.astype(jnp.float32).reshape(1, -1),
                             ((0, 0), (0, op - b.shape[0]))))
        state["bytes"] += 8 * op * 4       # (1, op) block rounds up to 8 sublanes

    for (w, b) in sigma_layers[:n_trunk]:                        # trunk (ReLU)
        prep_b(b, prep_w(w))
    prep_b(sigma_layers[-1][1], prep_w(sigma_layers[-1][0]))     # last sigma (ReLU)
    w_so, b_so = params["sigma_out"]
    sig_p = prep_w(w_so)                                         # sigma_out (linear)
    prep_b(b_so, sig_p)
    sigma_dim = w_so.shape[0]

    n_post = 0
    if has_color:
        d_dim = d.shape[1]
        d_p = _round_up(d_dim, 128)
        state["max_p"] = max(state["max_p"], d_p)
        trunk_dim = sigma_layers[n_trunk - 1][0].shape[0] if n_trunk > 0 else in_dim
        post = list(params["color_layers"]) + [params["color_out"]]
        n_post = len(post)
        w0, b0 = post[0]
        op0 = prep_w(w0[:, :trunk_dim])                          # trunk part
        prep_w(w0[:, trunk_dim:])                                # direction part
        prep_b(b0, op0)
        for (w, b) in post[1:]:
            prep_b(b, prep_w(w))
        color_dim = params["color_out"][0].shape[0]
        col_p = _round_up(color_dim, 128)

    # ---- row tiling: shrink the tile until everything fits the VMEM budget --
    in_p = _round_up(in_dim, 128)

    def vmem_est(rows):
        est = 2 * rows * in_p * cdt_sz + 2 * state["bytes"]
        est += 2 * rows * sig_p * cdt_sz
        est += 8 * rows * state["max_p"] * 4          # live f32 activation temps
        if has_color:
            est += 2 * rows * (d_p + col_p) * cdt_sz
        return est

    tm_eff = min(tm, _round_up(N, 8))
    while tm_eff > 8 and vmem_est(tm_eff) > (48 << 20):
        tm_eff = max(8, _round_up(tm_eff // 2, 8))
    n_rows = _round_up(N, tm_eff)
    vmem_limit = int(min(max(vmem_est(tm_eff) + (4 << 20), 32 << 20), 56 << 20))

    # ---- operands & specs ----------------------------------------------------
    operands = [jnp.pad(x, ((0, n_rows - N), (0, in_p - in_dim)))]
    in_specs = [pl.BlockSpec((tm_eff, in_p), lambda i: (i, 0))]
    if has_color:
        operands.append(jnp.pad(d.astype(cdt),
                                ((0, n_rows - N), (0, d_p - d_dim))))
        in_specs.append(pl.BlockSpec((tm_eff, d_p), lambda i: (i, 0)))
    for arr in w_ops:                      # weights/biases: resident, constant index
        operands.append(arr)
        in_specs.append(pl.BlockSpec(arr.shape, lambda i: (0, 0)))

    out_shape = [jax.ShapeDtypeStruct((n_rows, sig_p), cdt)]
    out_specs = [pl.BlockSpec((tm_eff, sig_p), lambda i: (i, 0))]
    if has_color:
        out_shape.append(jax.ShapeDtypeStruct((n_rows, col_p), cdt))
        out_specs.append(pl.BlockSpec((tm_eff, col_p), lambda i: (i, 0)))

    io_bytes = sum(int(a.size) * a.dtype.itemsize for a in operands)
    io_bytes += sum(int(s.shape[0]) * int(s.shape[1]) * cdt_sz for s in out_shape)
    cost = pl.CostEstimate(flops=int(state["flops_row"]) * int(n_rows),
                           transcendentals=0,
                           bytes_accessed=int(io_bytes))

    kernel = _make_nsvf_kernel(n_trunk, n_post, has_color, cdt)
    outs = pl.pallas_call(
        kernel,
        out_shape=tuple(out_shape),
        grid_spec=pltpu.PrefetchScalarGridSpec(
            num_scalar_prefetch=0,
            grid=(n_rows // tm_eff,),
            in_specs=in_specs,
            out_specs=tuple(out_specs),
        ),
        compiler_params=pltpu.CompilerParams(
            dimension_semantics=("parallel",),
            vmem_limit_bytes=vmem_limit,
        ),
        cost_estimate=cost,
    )(*operands)

    sigma = outs[0][:N, :sigma_dim]
    if not has_color:
        return sigma, None
    color = outs[1][:N, :color_dim]
    return sigma, color


# -----------------------------------------------------------------------------
# NSVF parameters (Kaiming fan_in init, zero biases — matches the PyTorch init).
# -----------------------------------------------------------------------------
def init_nsvf_params(key, p_dim, d_dim, z_dim=None, hid_dim=256, color_dim=1,
                     n_sigma_layers=4, n_color_layers=4):
    def kaiming(k, out_dim, in_dim, gain):
        std = gain / math.sqrt(in_dim)
        return std * jax.random.normal(k, (out_dim, in_dim), jnp.float32)

    keys = iter(jax.random.split(key, n_sigma_layers + n_color_layers + 2))
    relu_gain = math.sqrt(2.0)

    params = {"sigma_layers": [], "color_layers": []}
    in_dim = p_dim if z_dim is None else z_dim
    for i in range(n_sigma_layers):
        dim = hid_dim // 2 if i == n_sigma_layers - 1 else hid_dim
        w = kaiming(next(keys), dim, in_dim, relu_gain)
        params["sigma_layers"].append((w, jnp.zeros((dim,), jnp.float32)))
        in_dim = dim
    params["sigma_out"] = (kaiming(next(keys), 1, in_dim, 1.0),
                           jnp.zeros((1,), jnp.float32))
    in_dim = in_dim + d_dim if n_sigma_layers == 1 else hid_dim + d_dim
    for _ in range(n_color_layers):
        w = kaiming(next(keys), hid_dim, in_dim, relu_gain)
        params["color_layers"].append((w, jnp.zeros((hid_dim,), jnp.float32)))
        in_dim = hid_dim
    params["color_out"] = (kaiming(next(keys), color_dim, in_dim, 1.0),
                           jnp.zeros((color_dim,), jnp.float32))
    return params


def nsvf_reference(params, p, d=None, z=None):
    """Pure-JAX f32 reference of the same forward pass."""
    hi = jax.lax.Precision.HIGHEST

    def lin(x, w, b, relu):
        y = jnp.dot(x.astype(jnp.float32), w.astype(jnp.float32).T,
                    precision=hi) + b.astype(jnp.float32)
        return jnp.maximum(y, 0.0) if relu else y

    x = p if z is None else z
    for (w, b) in params["sigma_layers"][:-1]:
        x = lin(x, w, b, True)
    trunk = x
    w, b = params["sigma_layers"][-1]
    sigma = lin(trunk, w, b, True)
    w, b = params["sigma_out"]
    sigma = lin(sigma, w, b, False)
    if d is None:
        return sigma, None
    x = jnp.concatenate([trunk, d.astype(jnp.float32)], axis=-1)
    for (w, b) in params["color_layers"]:
        x = lin(x, w, b, True)
    w, b = params["color_out"]
    color = lin(x, w, b, False)
    return sigma, color


if __name__ == "__main__":
    key = jax.random.PRNGKey(0)
    k_par, k_p, k_d = jax.random.split(key, 3)

    # Small shapes consistent with the module.
    bs, p_dim, d_dim, hid_dim, color_dim = 64, 24, 12, 32, 3
    n_sigma_layers, n_color_layers = 3, 2

    params = init_nsvf_params(k_par, p_dim, d_dim, z_dim=None, hid_dim=hid_dim,
                              color_dim=color_dim,
                              n_sigma_layers=n_sigma_layers,
                              n_color_layers=n_color_layers)
    p = jax.random.normal(k_p, (bs, p_dim), jnp.float32)
    d = jax.random.normal(k_d, (bs, d_dim), jnp.float32)

    fwd = jax.jit(nsvf_forward)

    # Full path (sigma + color), f32.
    sigma, color = jax.block_until_ready(fwd(params, p, d))
    sigma_ref, color_ref = nsvf_reference(params, p, d)
    assert sigma.shape == (bs, 1) and color.shape == (bs, color_dim)
    assert jnp.allclose(sigma, sigma_ref, atol=2e-3, rtol=2e-3), "sigma mismatch"
    assert jnp.allclose(color, color_ref, atol=2e-3, rtol=2e-3), "color mismatch"

    # d=None path: only the sigma branch runs, color is None.
    sigma_only, color_none = fwd(params, p)
    sigma_only = jax.block_until_ready(sigma_only)
    assert color_none is None
    assert jnp.allclose(sigma_only, sigma_ref, atol=2e-3, rtol=2e-3)

    # bf16 end-to-end (bf16 MXU inputs + bf16 outputs, f32 accumulation).
    to_bf16 = lambda t: jax.tree_util.tree_map(
        lambda a: a.astype(jnp.bfloat16) if a.dtype == jnp.float32 else a, t)
    sigma_bf, color_bf = jax.block_until_ready(
        fwd(to_bf16(params), p.astype(jnp.bfloat16), d.astype(jnp.bfloat16)))
    assert sigma_bf.dtype == jnp.bfloat16 and color_bf.dtype == jnp.bfloat16
    err_s = float(jnp.mean(jnp.abs(sigma_bf.astype(jnp.float32) - sigma_ref)))
    err_c = float(jnp.mean(jnp.abs(color_bf.astype(jnp.float32) - color_ref)))
    assert err_s < 0.1 and err_c < 0.1, f"bf16 drift too large: {err_s}, {err_c}"

    print("KERNEL_OK")
</pallas_src>

<mosaic_0001>
module attributes {stable_mosaic.version = 11 : i64} {
  func.func @kernel(%arg0: i32, %arg1: memref<64x128xf32, #tpu.memory_space<vmem>>, %arg2: memref<64x128xf32, #tpu.memory_space<vmem>>, %arg3: memref<128x128xf32, #tpu.memory_space<vmem>>, %arg4: memref<1x128xf32, #tpu.memory_space<vmem>>, %arg5: memref<128x128xf32, #tpu.memory_space<vmem>>, %arg6: memref<1x128xf32, #tpu.memory_space<vmem>>, %arg7: memref<128x128xf32, #tpu.memory_space<vmem>>, %arg8: memref<1x128xf32, #tpu.memory_space<vmem>>, %arg9: memref<128x128xf32, #tpu.memory_space<vmem>>, %arg10: memref<1x128xf32, #tpu.memory_space<vmem>>, %arg11: memref<128x128xf32, #tpu.memory_space<vmem>>, %arg12: memref<128x128xf32, #tpu.memory_space<vmem>>, %arg13: memref<1x128xf32, #tpu.memory_space<vmem>>, %arg14: memref<128x128xf32, #tpu.memory_space<vmem>>, %arg15: memref<1x128xf32, #tpu.memory_space<vmem>>, %arg16: memref<128x128xf32, #tpu.memory_space<vmem>>, %arg17: memref<1x128xf32, #tpu.memory_space<vmem>>, %arg18: memref<64x128xf32, #tpu.memory_space<vmem>>, %arg19: memref<64x128xf32, #tpu.memory_space<vmem>>) attributes {dimension_semantics = [#tpu.dimension_semantics<parallel>], iteration_bounds = array<i64: 1>, scalar_prefetch = 0 : i64, scratch_operands = 0 : i64, tpu.core_type = #tpu.core_type<tc>, window_params = [{transform_indices = @transform_0, window_bounds = array<i64: 64, 128>}, {transform_indices = @transform_1, window_bounds = array<i64: 64, 128>}, {pipeline_mode = #tpu.pipeline_mode<synchronous>, transform_indices = @transform_2, window_bounds = array<i64: 128, 128>}, {pipeline_mode = #tpu.pipeline_mode<synchronous>, transform_indices = @transform_3, window_bounds = array<i64: 1, 128>}, {pipeline_mode = #tpu.pipeline_mode<synchronous>, transform_indices = @transform_4, window_bounds = array<i64: 128, 128>}, {pipeline_mode = #tpu.pipeline_mode<synchronous>, transform_indices = @transform_5, window_bounds = array<i64: 1, 128>}, {pipeline_mode = #tpu.pipeline_mode<synchronous>, transform_indices = @transform_6, window_bounds = array<i64: 128, 128>}, {pipeline_mode = #tpu.pipeline_mode<synchronous>, transform_indices = @transform_7, window_bounds = array<i64: 1, 128>}, {pipeline_mode = #tpu.pipeline_mode<synchronous>, transform_indices = @transform_8, window_bounds = array<i64: 128, 128>}, {pipeline_mode = #tpu.pipeline_mode<synchronous>, transform_indices = @transform_9, window_bounds = array<i64: 1, 128>}, {pipeline_mode = #tpu.pipeline_mode<synchronous>, transform_indices = @transform_10, window_bounds = array<i64: 128, 128>}, {pipeline_mode = #tpu.pipeline_mode<synchronous>, transform_indices = @transform_11, window_bounds = array<i64: 128, 128>}, {pipeline_mode = #tpu.pipeline_mode<synchronous>, transform_indices = @transform_12, window_bounds = array<i64: 1, 128>}, {pipeline_mode = #tpu.pipeline_mode<synchronous>, transform_indices = @transform_13, window_bounds = array<i64: 128, 128>}, {pipeline_mode = #tpu.pipeline_mode<synchronous>, transform_indices = @transform_14, window_bounds = array<i64: 1, 128>}, {pipeline_mode = #tpu.pipeline_mode<synchronous>, transform_indices = @transform_15, window_bounds = array<i64: 128, 128>}, {pipeline_mode = #tpu.pipeline_mode<synchronous>, transform_indices = @transform_16, window_bounds = array<i64: 1, 128>}, {transform_indices = @transform_17, window_bounds = array<i64: 64, 128>}, {transform_indices = @transform_18, window_bounds = array<i64: 64, 128>}]} {
    %c0 = arith.constant 0 : index
    %c0_0 = arith.constant 0 : index
    %0 = vector.load %arg1[%c0, %c0_0] : memref<64x128xf32, #tpu.memory_space<vmem>>, vector<64x128xf32>
    %c0_1 = arith.constant 0 : index
    %c0_2 = arith.constant 0 : index
    %1 = vector.load %arg3[%c0_1, %c0_2] : memref<128x128xf32, #tpu.memory_space<vmem>>, vector<128x128xf32>
    %cst = arith.constant dense<0.000000e+00> : vector<64x128xf32>
    %2 = tpu.matmul %0, %1, %cst {dimension_numbers = #tpu.dot_dimension_numbers<[1], [0], [0], [1], [0, 0, 1, 1], [], []>} : vector<64x128xf32>, vector<128x128xf32>, vector<64x128xf32> -> vector<64x128xf32>
    %c0_3 = arith.constant 0 : index
    %c0_4 = arith.constant 0 : index
    %3 = vector.load %arg4[%c0_3, %c0_4] : memref<1x128xf32, #tpu.memory_space<vmem>>, vector<1x128xf32>
    %4 = vector.broadcast %3 : vector<1x128xf32> to vector<64x128xf32>
    %5 = arith.addf %2, %4 : vector<64x128xf32>
    %cst_5 = arith.constant 0.000000e+00 : f32
    %6 = vector.broadcast %cst_5 : f32 to vector<64x128xf32>
    %7 = arith.maximumf %5, %6 : vector<64x128xf32>
    %c0_6 = arith.constant 0 : index
    %c0_7 = arith.constant 0 : index
    %8 = vector.load %arg5[%c0_6, %c0_7] : memref<128x128xf32, #tpu.memory_space<vmem>>, vector<128x128xf32>
    %cst_8 = arith.constant dense<0.000000e+00> : vector<64x128xf32>
    %9 = tpu.matmul %7, %8, %cst_8 {dimension_numbers = #tpu.dot_dimension_numbers<[1], [0], [0], [1], [0, 0, 1, 1], [], []>} : vector<64x128xf32>, vector<128x128xf32>, vector<64x128xf32> -> vector<64x128xf32>
    %c0_9 = arith.constant 0 : index
    %c0_10 = arith.constant 0 : index
    %10 = vector.load %arg6[%c0_9, %c0_10] : memref<1x128xf32, #tpu.memory_space<vmem>>, vector<1x128xf32>
    %11 = vector.broadcast %10 : vector<1x128xf32> to vector<64x128xf32>
    %12 = arith.addf %9, %11 : vector<64x128xf32>
    %cst_11 = arith.constant 0.000000e+00 : f32
    %13 = vector.broadcast %cst_11 : f32 to vector<64x128xf32>
    %14 = arith.maximumf %12, %13 : vector<64x128xf32>
    %c0_12 = arith.constant 0 : index
    %c0_13 = arith.constant 0 : index
    %15 = vector.load %arg7[%c0_12, %c0_13] : memref<128x128xf32, #tpu.memory_space<vmem>>, vector<128x128xf32>
    %cst_14 = arith.constant dense<0.000000e+00> : vector<64x128xf32>
    %16 = tpu.matmul %14, %15, %cst_14 {dimension_numbers = #tpu.dot_dimension_numbers<[1], [0], [0], [1], [0, 0, 1, 1], [], []>} : vector<64x128xf32>, vector<128x128xf32>, vector<64x128xf32> -> vector<64x128xf32>
    %c0_15 = arith.constant 0 : index
    %c0_16 = arith.constant 0 : index
    %17 = vector.load %arg8[%c0_15, %c0_16] : memref<1x128xf32, #tpu.memory_space<vmem>>, vector<1x128xf32>
    %18 = vector.broadcast %17 : vector<1x128xf32> to vector<64x128xf32>
    %19 = arith.addf %16, %18 : vector<64x128xf32>
    %cst_17 = arith.constant 0.000000e+00 : f32
    %20 = vector.broadcast %cst_17 : f32 to vector<64x128xf32>
    %21 = arith.maximumf %19, %20 : vector<64x128xf32>
    %c0_18 = arith.constant 0 : index
    %c0_19 = arith.constant 0 : index
    %22 = vector.load %arg9[%c0_18, %c0_19] : memref<128x128xf32, #tpu.memory_space<vmem>>, vector<128x128xf32>
    %cst_20 = arith.constant dense<0.000000e+00> : vector<64x128xf32>
    %23 = tpu.matmul %21, %22, %cst_20 {dimension_numbers = #tpu.dot_dimension_numbers<[1], [0], [0], [1], [0, 0, 1, 1], [], []>} : vector<64x128xf32>, vector<128x128xf32>, vector<64x128xf32> -> vector<64x128xf32>
    %c0_21 = arith.constant 0 : index
    %c0_22 = arith.constant 0 : index
    %24 = vector.load %arg10[%c0_21, %c0_22] : memref<1x128xf32, #tpu.memory_space<vmem>>, vector<1x128xf32>
    %25 = vector.broadcast %24 : vector<1x128xf32> to vector<64x128xf32>
    %26 = arith.addf %23, %25 : vector<64x128xf32>
    %c0_23 = arith.constant 0 : index
    %c0_24 = arith.constant 0 : index
    %27 = vector.load %arg18[%c0_23, %c0_24] : memref<64x128xf32, #tpu.memory_space<vmem>>, vector<64x128xf32>
    tpu.vector_store %arg18[%c0_23, %c0_24], %26 {strides = array<i32>} : memref<64x128xf32, #tpu.memory_space<vmem>>, vector<64x128xf32>,
    %c0_25 = arith.constant 0 : index
    %c0_26 = arith.constant 0 : index
    %28 = vector.load %arg11[%c0_25, %c0_26] : memref<128x128xf32, #tpu.memory_space<vmem>>, vector<128x128xf32>
    %cst_27 = arith.constant dense<0.000000e+00> : vector<64x128xf32>
    %29 = tpu.matmul %14, %28, %cst_27 {dimension_numbers = #tpu.dot_dimension_numbers<[1], [0], [0], [1], [0, 0, 1, 1], [], []>} : vector<64x128xf32>, vector<128x128xf32>, vector<64x128xf32> -> vector<64x128xf32>
    %c0_28 = arith.constant 0 : index
    %c0_29 = arith.constant 0 : index
    %30 = vector.load %arg2[%c0_28, %c0_29] : memref<64x128xf32, #tpu.memory_space<vmem>>, vector<64x128xf32>
    %c0_30 = arith.constant 0 : index
    %c0_31 = arith.constant 0 : index
    %31 = vector.load %arg12[%c0_30, %c0_31] : memref<128x128xf32, #tpu.memory_space<vmem>>, vector<128x128xf32>
    %cst_32 = arith.constant dense<0.000000e+00> : vector<64x128xf32>
    %32 = tpu.matmul %30, %31, %cst_32 {dimension_numbers = #tpu.dot_dimension_numbers<[1], [0], [0], [1], [0, 0, 1, 1], [], []>} : vector<64x128xf32>, vector<128x128xf32>, vector<64x128xf32> -> vector<64x128xf32>
    %33 = arith.addf %29, %32 : vector<64x128xf32>
    %c0_33 = arith.constant 0 : index
    %c0_34 = arith.constant 0 : index
    %34 = vector.load %arg13[%c0_33, %c0_34] : memref<1x128xf32, #tpu.memory_space<vmem>>, vector<1x128xf32>
    %35 = vector.broadcast %34 : vector<1x128xf32> to vector<64x128xf32>
    %36 = arith.addf %33, %35 : vector<64x128xf32>
    %cst_35 = arith.constant 0.000000e+00 : f32
    %37 = vector.broadcast %cst_35 : f32 to vector<64x128xf32>
    %38 = arith.maximumf %36, %37 : vector<64x128xf32>
    %c0_36 = arith.constant 0 : index
    %c0_37 = arith.constant 0 : index
    %39 = vector.load %arg14[%c0_36, %c0_37] : memref<128x128xf32, #tpu.memory_space<vmem>>, vector<128x128xf32>
    %cst_38 = arith.constant dense<0.000000e+00> : vector<64x128xf32>
    %40 = tpu.matmul %38, %39, %cst_38 {dimension_numbers = #tpu.dot_dimension_numbers<[1], [0], [0], [1], [0, 0, 1, 1], [], []>} : vector<64x128xf32>, vector<128x128xf32>, vector<64x128xf32> -> vector<64x128xf32>
    %c0_39 = arith.constant 0 : index
    %c0_40 = arith.constant 0 : index
    %41 = vector.load %arg15[%c0_39, %c0_40] : memref<1x128xf32, #tpu.memory_space<vmem>>, vector<1x128xf32>
    %42 = vector.broadcast %41 : vector<1x128xf32> to vector<64x128xf32>
    %43 = arith.addf %40, %42 : vector<64x128xf32>
    %cst_41 = arith.constant 0.000000e+00 : f32
    %44 = vector.broadcast %cst_41 : f32 to vector<64x128xf32>
    %45 = arith.maximumf %43, %44 : vector<64x128xf32>
    %c0_42 = arith.constant 0 : index
    %c0_43 = arith.constant 0 : index
    %46 = vector.load %arg16[%c0_42, %c0_43] : memref<128x128xf32, #tpu.memory_space<vmem>>, vector<128x128xf32>
    %cst_44 = arith.constant dense<0.000000e+00> : vector<64x128xf32>
    %47 = tpu.matmul %45, %46, %cst_44 {dimension_numbers = #tpu.dot_dimension_numbers<[1], [0], [0], [1], [0, 0, 1, 1], [], []>} : vector<64x128xf32>, vector<128x128xf32>, vector<64x128xf32> -> vector<64x128xf32>
    %c0_45 = arith.constant 0 : index
    %c0_46 = arith.constant 0 : index
    %48 = vector.load %arg17[%c0_45, %c0_46] : memref<1x128xf32, #tpu.memory_space<vmem>>, vector<1x128xf32>
    %49 = vector.broadcast %48 : vector<1x128xf32> to vector<64x128xf32>
    %50 = arith.addf %47, %49 : vector<64x128xf32>
    %c0_47 = arith.constant 0 : index
    %c0_48 = arith.constant 0 : index
    %51 = vector.load %arg19[%c0_47, %c0_48] : memref<64x128xf32, #tpu.memory_space<vmem>>, vector<64x128xf32>
    tpu.vector_store %arg19[%c0_47, %c0_48], %50 {strides = array<i32>} : memref<64x128xf32, #tpu.memory_space<vmem>>, vector<64x128xf32>,
    return
  }
  func.func @transform_0(%arg0: i32) -> (i32, i32) {
    %c0_i32 = arith.constant 0 : i32
    %c0_i32_0 = arith.constant 0 : i32
    return %arg0, %c0_i32 : i32, i32
  }
  func.func @transform_1(%arg0: i32) -> (i32, i32) {
    %c0_i32 = arith.constant 0 : i32
    %c0_i32_0 = arith.constant 0 : i32
    return %arg0, %c0_i32 : i32, i32
  }
  func.func @transform_2(%arg0: i32) -> (i32, i32) {
    %c0_i32 = arith.constant 0 : i32
    %c0_i32_0 = arith.constant 0 : i32
    %c0_i32_1 = arith.constant 0 : i32
    return %c0_i32, %c0_i32_0 : i32, i32
  }
  func.func @transform_3(%arg0: i32) -> (i32, i32) {
    %c0_i32 = arith.constant 0 : i32
    %c0_i32_0 = arith.constant 0 : i32
    %c0_i32_1 = arith.constant 0 : i32
    return %c0_i32, %c0_i32_0 : i32, i32
  }
  func.func @transform_4(%arg0: i32) -> (i32, i32) {
    %c0_i32 = arith.constant 0 : i32
    %c0_i32_0 = arith.constant 0 : i32
    %c0_i32_1 = arith.constant 0 : i32
    return %c0_i32, %c0_i32_0 : i32, i32
  }
  func.func @transform_5(%arg0: i32) -> (i32, i32) {
    %c0_i32 = arith.constant 0 : i32
    %c0_i32_0 = arith.constant 0 : i32
    %c0_i32_1 = arith.constant 0 : i32
    return %c0_i32, %c0_i32_0 : i32, i32
  }
  func.func @transform_6(%arg0: i32) -> (i32, i32) {
    %c0_i32 = arith.constant 0 : i32
    %c0_i32_0 = arith.constant 0 : i32
    %c0_i32_1 = arith.constant 0 : i32
    return %c0_i32, %c0_i32_0 : i32, i32
  }
  func.func @transform_7(%arg0: i32) -> (i32, i32) {
    %c0_i32 = arith.constant 0 : i32
    %c0_i32_0 = arith.constant 0 : i32
    %c0_i32_1 = arith.constant 0 : i32
    return %c0_i32, %c0_i32_0 : i32, i32
  }
  func.func @transform_8(%arg0: i32) -> (i32, i32) {
    %c0_i32 = arith.constant 0 : i32
    %c0_i32_0 = arith.constant 0 : i32
    %c0_i32_1 = arith.constant 0 : i32
    return %c0_i32, %c0_i32_0 : i32, i32
  }
  func.func @transform_9(%arg0: i32) -> (i32, i32) {
    %c0_i32 = arith.constant 0 : i32
    %c0_i32_0 = arith.constant 0 : i32
    %c0_i32_1 = arith.constant 0 : i32
    return %c0_i32, %c0_i32_0 : i32, i32
  }
  func.func @transform_10(%arg0: i32) -> (i32, i32) {
    %c0_i32 = arith.constant 0 : i32
    %c0_i32_0 = arith.constant 0 : i32
    %c0_i32_1 = arith.constant 0 : i32
    return %c0_i32, %c0_i32_0 : i32, i32
  }
  func.func @transform_11(%arg0: i32) -> (i32, i32) {
    %c0_i32 = arith.constant 0 : i32
    %c0_i32_0 = arith.constant 0 : i32
    %c0_i32_1 = arith.constant 0 : i32
    return %c0_i32, %c0_i32_0 : i32, i32
  }
  func.func @transform_12(%arg0: i32) -> (i32, i32) {
    %c0_i32 = arith.constant 0 : i32
    %c0_i32_0 = arith.constant 0 : i32
    %c0_i32_1 = arith.constant 0 : i32
    return %c0_i32, %c0_i32_0 : i32, i32
  }
  func.func @transform_13(%arg0: i32) -> (i32, i32) {
    %c0_i32 = arith.constant 0 : i32
    %c0_i32_0 = arith.constant 0 : i32
    %c0_i32_1 = arith.constant 0 : i32
    return %c0_i32, %c0_i32_0 : i32, i32
  }
  func.func @transform_14(%arg0: i32) -> (i32, i32) {
    %c0_i32 = arith.constant 0 : i32
    %c0_i32_0 = arith.constant 0 : i32
    %c0_i32_1 = arith.constant 0 : i32
    return %c0_i32, %c0_i32_0 : i32, i32
  }
  func.func @transform_15(%arg0: i32) -> (i32, i32) {
    %c0_i32 = arith.constant 0 : i32
    %c0_i32_0 = arith.constant 0 : i32
    %c0_i32_1 = arith.constant 0 : i32
    return %c0_i32, %c0_i32_0 : i32, i32
  }
  func.func @transform_16(%arg0: i32) -> (i32, i32) {
    %c0_i32 = arith.constant 0 : i32
    %c0_i32_0 = arith.constant 0 : i32
    %c0_i32_1 = arith.constant 0 : i32
    return %c0_i32, %c0_i32_0 : i32, i32
  }
  func.func @transform_17(%arg0: i32) -> (i32, i32) {
    %c0_i32 = arith.constant 0 : i32
    %c0_i32_0 = arith.constant 0 : i32
    return %arg0, %c0_i32 : i32, i32
  }
  func.func @transform_18(%arg0: i32) -> (i32, i32) {
    %c0_i32 = arith.constant 0 : i32
    %c0_i32_0 = arith.constant 0 : i32
    return %arg0, %c0_i32 : i32, i32
  }
}

</mosaic_0001>

<llo_original>
// kernel: nsvf_forward.1
$region0: #{nsvf_forward.1}
  #allocation0 [shape = 'u32[]', space=smem, size = 0x4, offset = 0x4, fixed_abs, tag = 'smem constant byte address 0x4 - core index']
  #allocation1 [shape = 'u32[72,128]{1,0:T(1,128)}', space=vmem, size = 0x9000, scoped, tag = 'internal scratch']
  %s0 = inlined_call_operand.vmem [shape: f32[64,128], index: 0, kind: input, shape index: {}]
  %s1 = inlined_call_operand.vmem [shape: f32[64,128], index: 1, kind: input, shape index: {}]
  %s2 = inlined_call_operand.vmem [shape: f32[128,128], index: 2, kind: input, shape index: {}]
  %s3 = inlined_call_operand.vmem [shape: f32[1,128], index: 3, kind: input, shape index: {}]
  %s4 = inlined_call_operand.vmem [shape: f32[128,128], index: 4, kind: input, shape index: {}]
  %s5 = inlined_call_operand.vmem [shape: f32[1,128], index: 5, kind: input, shape index: {}]
  %s6 = inlined_call_operand.vmem [shape: f32[128,128], index: 6, kind: input, shape index: {}]
  %s7 = inlined_call_operand.vmem [shape: f32[1,128], index: 7, kind: input, shape index: {}]
  %s8 = inlined_call_operand.vmem [shape: f32[128,128], index: 8, kind: input, shape index: {}]
  %s9 = inlined_call_operand.vmem [shape: f32[1,128], index: 9, kind: input, shape index: {}]
  %s10 = inlined_call_operand.vmem [shape: f32[128,128], index: 10, kind: input, shape index: {}]
  %s11 = inlined_call_operand.vmem [shape: f32[128,128], index: 11, kind: input, shape index: {}]
  %s12 = inlined_call_operand.vmem [shape: f32[1,128], index: 12, kind: input, shape index: {}]
  %s13 = inlined_call_operand.vmem [shape: f32[128,128], index: 13, kind: input, shape index: {}]
  %s14 = inlined_call_operand.vmem [shape: f32[1,128], index: 14, kind: input, shape index: {}]
  %s15 = inlined_call_operand.vmem [shape: f32[128,128], index: 15, kind: input, shape index: {}]
  %s16 = inlined_call_operand.vmem [shape: f32[1,128], index: 16, kind: input, shape index: {}]
  %s17 = inlined_call_operand.vmem [shape: f32[64,128], index: 17, kind: output, shape index: {0}]
  %s18 = inlined_call_operand.vmem [shape: f32[64,128], index: 18, kind: output, shape index: {1}]
  %19 = xla_tuple %s17, %s18
  %s20 = sld [smem:[#allocation0]]
  $region86: #{nsvf_forward.1} parent=0
    _
  %s22 = ssub.s32 1, %s20
  %s23 = scalar_select 0, %s22, %s20
  // Predicated region
  $region2: #{nsvf_forward.1} parent=0 // pred_check
    _
  $region3: #{nsvf_forward.1} parent=0 // pred_check_branch
    %25 = sbr.rel (0) target = $region5
  $region4: #{nsvf_forward.1} parent=0 // pred_region
    _
  $region5: #{nsvf_forward.1} parent=0 // pred_fallthru
    _
  // Predicated region
  $region6: #{nsvf_forward.1} parent=0 // pred_check
    _
  $region7: #{nsvf_forward.1} parent=0 // pred_check_branch
    %27 = sbr.rel (0) target = $region9
  $region8: #{nsvf_forward.1} parent=0 // pred_region
    _
  $region9: #{nsvf_forward.1} parent=0 // pred_fallthru
    _
  // Predicated region
  $region10: #{nsvf_forward.1} parent=0 // pred_check
    _
  $region11: #{nsvf_forward.1} parent=0 // pred_check_branch
    %29 = sbr.rel (0) target = $region13
  $region12: #{nsvf_forward.1} parent=0 // pred_region
    _
  $region13: #{nsvf_forward.1} parent=0 // pred_fallthru
    _
  // Predicated region
  $region14: #{nsvf_forward.1} parent=0 // pred_check
    _
  $region15: #{nsvf_forward.1} parent=0 // pred_check_branch
    %31 = sbr.rel (0) target = $region17
  $region16: #{nsvf_forward.1} parent=0 // pred_region
    _
  $region17: #{nsvf_forward.1} parent=0 // pred_fallthru
    _
  // Predicated region
  $region18: #{nsvf_forward.1} parent=0 // pred_check
    _
  $region19: #{nsvf_forward.1} parent=0 // pred_check_branch
    %33 = sbr.rel (0) target = $region21
  $region20: #{nsvf_forward.1} parent=0 // pred_region
    _
  $region21: #{nsvf_forward.1} parent=0 // pred_fallthru
    _
  // Predicated region
  $region22: #{nsvf_forward.1} parent=0 // pred_check
    _
  $region23: #{nsvf_forward.1} parent=0 // pred_check_branch
    %35 = sbr.rel (0) target = $region25
  $region24: #{nsvf_forward.1} parent=0 // pred_region
    _
  $region25: #{nsvf_forward.1} parent=0 // pred_fallthru
    _
  // Predicated region
  $region26: #{nsvf_forward.1} parent=0 // pred_check
    _
  $region27: #{nsvf_forward.1} parent=0 // pred_check_branch
    %37 = sbr.rel (0) target = $region29
  $region28: #{nsvf_forward.1} parent=0 // pred_region
    _
  $region29: #{nsvf_forward.1} parent=0 // pred_fallthru
    _
  // Predicated region
  $region30: #{nsvf_forward.1} parent=0 // pred_check
    _
  $region31: #{nsvf_forward.1} parent=0 // pred_check_branch
    %39 = sbr.rel (0) target = $region33
  $region32: #{nsvf_forward.1} parent=0 // pred_region
    _
  $region33: #{nsvf_forward.1} parent=0 // pred_fallthru
    _
  // Predicated region
  $region34: #{nsvf_forward.1} parent=0 // pred_check
    _
  $region35: #{nsvf_forward.1} parent=0 // pred_check_branch
    %41 = sbr.rel (0) target = $region37
  $region36: #{nsvf_forward.1} parent=0 // pred_region
    _
  $region37: #{nsvf_forward.1} parent=0 // pred_fallthru
    _
  // Predicated region
  $region38: #{nsvf_forward.1} parent=0 // pred_check
    _
  $region39: #{nsvf_forward.1} parent=0 // pred_check_branch
    %43 = sbr.rel (0) target = $region41
  $region40: #{nsvf_forward.1} parent=0 // pred_region
    _
  $region41: #{nsvf_forward.1} parent=0 // pred_fallthru
    _
  // Predicated region
  $region42: #{nsvf_forward.1} parent=0 // pred_check
    _
  $region43: #{nsvf_forward.1} parent=0 // pred_check_branch
    %45 = sbr.rel (0) target = $region45
  $region44: #{nsvf_forward.1} parent=0 // pred_region
    _
  $region45: #{nsvf_forward.1} parent=0 // pred_fallthru
    _
  // Predicated region
  $region46: #{nsvf_forward.1} parent=0 // pred_check
    _
  $region47: #{nsvf_forward.1} parent=0 // pred_check_branch
    %47 = sbr.rel (0) target = $region49
  $region48: #{nsvf_forward.1} parent=0 // pred_region
    _
  $region49: #{nsvf_forward.1} parent=0 // pred_fallthru
    _
  // Predicated region
  $region50: #{nsvf_forward.1} parent=0 // pred_check
    _
  $region51: #{nsvf_forward.1} parent=0 // pred_check_branch
    %49 = sbr.rel (0) target = $region53
  $region52: #{nsvf_forward.1} parent=0 // pred_region
    _
  $region53: #{nsvf_forward.1} parent=0 // pred_fallthru
    _
  // Predicated region
  $region54: #{nsvf_forward.1} parent=0 // pred_check
    _
  $region55: #{nsvf_forward.1} parent=0 // pred_check_branch
    %51 = sbr.rel (0) target = $region57
  $region56: #{nsvf_forward.1} parent=0 // pred_region
    _
  $region57: #{nsvf_forward.1} parent=0 // pred_fallthru
    _
  // Predicated region
  $region58: #{nsvf_forward.1} parent=0 // pred_check
    _
  $region59: #{nsvf_forward.1} parent=0 // pred_check_branch
    %53 = sbr.rel (0) target = $region61
  $region60: #{nsvf_forward.1} parent=0 // pred_region
    _
  $region61: #{nsvf_forward.1} parent=0 // pred_fallthru
    _
  // Predicated region
  $region62: #{nsvf_forward.1} parent=0 // pred_check
    _
  $region63: #{nsvf_forward.1} parent=0 // pred_check_branch
    %55 = sbr.rel (0) target = $region65
  $region64: #{nsvf_forward.1} parent=0 // pred_region
    _
  $region65: #{nsvf_forward.1} parent=0 // pred_fallthru
    _
  // Predicated region
  $region66: #{nsvf_forward.1} parent=0 // pred_check
    _
  $region67: #{nsvf_forward.1} parent=0 // pred_check_branch
    %57 = sbr.rel (0) target = $region69
  $region68: #{nsvf_forward.1} parent=0 // pred_region
    _
  $region69: #{nsvf_forward.1} parent=0 // pred_fallthru
    _
  %v58 = vld [vmem:[%s0] sm:$0xff]
  %v59 = vld [vmem:[%s0 + $0x8] sm:$0xff]
  %v60 = vld [vmem:[%s0 + $0x10] sm:$0xff]
  %v61 = vld [vmem:[%s0 + $0x18] sm:$0xff]
  %v62 = vld [vmem:[%s0 + $0x20] sm:$0xff]
  %v63 = vld [vmem:[%s0 + $0x28] sm:$0xff]
  %v64 = vld [vmem:[%s0 + $0x30] sm:$0xff]
  %v65 = vld [vmem:[%s0 + $0x38] sm:$0xff]
  %v66 = vld [vmem:[%s2] sm:$0xff]
  %v67 = vld [vmem:[%s2 + $0x8] sm:$0xff]
  %v68 = vld [vmem:[%s2 + $0x10] sm:$0xff]
  %v69 = vld [vmem:[%s2 + $0x18] sm:$0xff]
  %v70 = vld [vmem:[%s2 + $0x20] sm:$0xff]
  %v71 = vld [vmem:[%s2 + $0x28] sm:$0xff]
  %v72 = vld [vmem:[%s2 + $0x30] sm:$0xff]
  %v73 = vld [vmem:[%s2 + $0x38] sm:$0xff]
  %v74 = vld [vmem:[%s2 + $0x40] sm:$0xff]
  %v75 = vld [vmem:[%s2 + $0x48] sm:$0xff]
  %v76 = vld [vmem:[%s2 + $0x50] sm:$0xff]
  %v77 = vld [vmem:[%s2 + $0x58] sm:$0xff]
  %v78 = vld [vmem:[%s2 + $0x60] sm:$0xff]
  %v79 = vld [vmem:[%s2 + $0x68] sm:$0xff]
  %v80 = vld [vmem:[%s2 + $0x70] sm:$0xff]
  %v81 = vld [vmem:[%s2 + $0x78] sm:$0xff]
  %v82 = vld [vmem:[%s3] sm:$0x1]
  %v84 = vperm.slane %v82, 0
  %86 = vmatpush.msra.mxu0 %v81
  %87 = vmatpush.msra.mxu0 %v80
  %88 = vmatpush.msra.mxu0 %v79
  %89 = vmatpush.msra.mxu0 %v78
  %90 = vmatpush.msra.mxu0 %v77
  %91 = vmatpush.msra.mxu0 %v76
  %92 = vmatpush.msra.mxu0 %v75
  %93 = vmatpush.msra.mxu0 %v74
  %94 = vmatpush.msra.mxu0 %v73
  %95 = vmatpush.msra.mxu0 %v72
  %96 = vmatpush.msra.mxu0 %v71
  %97 = vmatpush.msra.mxu0 %v70
  %98 = vmatpush.msra.mxu0 %v69
  %99 = vmatpush.msra.mxu0 %v68
  %100 = vmatpush.msra.mxu0 %v67
  %101 = vmatpush.msra.mxu0 %v66
  %102 = vmatmul.f32.gmra.mxu0 %v58
  %v103 = vpop.f32.mrf.mxu0
  %v104 = vadd.f32 %v84, %v103
  %105 = vmatmul.f32.gmra.mxu0 %v59
  %v106 = vpop.f32.mrf.mxu0
  %v107 = vadd.f32 %v84, %v106
  %108 = vmatmul.f32.gmra.mxu0 %v60
  %v109 = vpop.f32.mrf.mxu0
  %v110 = vadd.f32 %v84, %v109
  %111 = vmatmul.f32.gmra.mxu0 %v61
  %v112 = vpop.f32.mrf.mxu0
  %v113 = vadd.f32 %v84, %v112
  %114 = vmatmul.f32.gmra.mxu0 %v62
  %v115 = vpop.f32.mrf.mxu0
  %v116 = vadd.f32 %v84, %v115
  %117 = vmatmul.f32.gmra.mxu0 %v63
  %v118 = vpop.f32.mrf.mxu0
  %v119 = vadd.f32 %v84, %v118
  %120 = vmatmul.f32.gmra.mxu0 %v64
  %v121 = vpop.f32.mrf.mxu0
  %v122 = vadd.f32 %v84, %v121
  %123 = vmatmul.f32.gmra.mxu0 %v65
  %v124 = vpop.f32.mrf.mxu0
  %v125 = vadd.f32 %v84, %v124
  %126 = vdwg.mxu0
  %v127 = vmax.f32 %v104, 0.0
  %v128 = vmax.f32 %v107, 0.0
  %v129 = vmax.f32 %v110, 0.0
  %v130 = vmax.f32 %v113, 0.0
  %v131 = vmax.f32 %v116, 0.0
  %v132 = vmax.f32 %v119, 0.0
  %v133 = vmax.f32 %v122, 0.0
  %v134 = vmax.f32 %v125, 0.0
  %v135 = vld [vmem:[%s4] sm:$0xff]
  %v136 = vld [vmem:[%s4 + $0x8] sm:$0xff]
  %v137 = vld [vmem:[%s4 + $0x10] sm:$0xff]
  %v138 = vld [vmem:[%s4 + $0x18] sm:$0xff]
  %v139 = vld [vmem:[%s4 + $0x20] sm:$0xff]
  %v140 = vld [vmem:[%s4 + $0x28] sm:$0xff]
  %v141 = vld [vmem:[%s4 + $0x30] sm:$0xff]
  %v142 = vld [vmem:[%s4 + $0x38] sm:$0xff]
  %v143 = vld [vmem:[%s4 + $0x40] sm:$0xff]
  %v144 = vld [vmem:[%s4 + $0x48] sm:$0xff]
  %v145 = vld [vmem:[%s4 + $0x50] sm:$0xff]
  %v146 = vld [vmem:[%s4 + $0x58] sm:$0xff]
  %v147 = vld [vmem:[%s4 + $0x60] sm:$0xff]
  %v148 = vld [vmem:[%s4 + $0x68] sm:$0xff]
  %v149 = vld [vmem:[%s4 + $0x70] sm:$0xff]
  %v150 = vld [vmem:[%s4 + $0x78] sm:$0xff]
  %v151 = vld [vmem:[%s5] sm:$0x1]
  %v153 = vperm.slane %v151, 0
  %155 = vmatpush.msra.mxu0 %v150
  %156 = vmatpush.msra.mxu0 %v149
  %157 = vmatpush.msra.mxu0 %v148
  %158 = vmatpush.msra.mxu0 %v147
  %159 = vmatpush.msra.mxu0 %v146
  %160 = vmatpush.msra.mxu0 %v145
  %161 = vmatpush.msra.mxu0 %v144
  %162 = vmatpush.msra.mxu0 %v143
  %163 = vmatpush.msra.mxu0 %v142
  %164 = vmatpush.msra.mxu0 %v141
  %165 = vmatpush.msra.mxu0 %v140
  %166 = vmatpush.msra.mxu0 %v139
  %167 = vmatpush.msra.mxu0 %v138
  %168 = vmatpush.msra.mxu0 %v137
  %169 = vmatpush.msra.mxu0 %v136
  %170 = vmatpush.msra.mxu0 %v135
  %171 = vmatmul.f32.gmra.mxu0 %v127
  %v172 = vpop.f32.mrf.mxu0
  %v173 = vadd.f32 %v153, %v172
  %174 = vmatmul.f32.gmra.mxu0 %v128
  %v175 = vpop.f32.mrf.mxu0
  %v176 = vadd.f32 %v153, %v175
  %177 = vmatmul.f32.gmra.mxu0 %v129
  %v178 = vpop.f32.mrf.mxu0
  %v179 = vadd.f32 %v153, %v178
  %180 = vmatmul.f32.gmra.mxu0 %v130
  %v181 = vpop.f32.mrf.mxu0
  %v182 = vadd.f32 %v153, %v181
  %183 = vmatmul.f32.gmra.mxu0 %v131
  %v184 = vpop.f32.mrf.mxu0
  %v185 = vadd.f32 %v153, %v184
  %186 = vmatmul.f32.gmra.mxu0 %v132
  %v187 = vpop.f32.mrf.mxu0
  %v188 = vadd.f32 %v153, %v187
  %189 = vmatmul.f32.gmra.mxu0 %v133
  %v190 = vpop.f32.mrf.mxu0
  %v191 = vadd.f32 %v153, %v190
  %192 = vmatmul.f32.gmra.mxu0 %v134
  %v193 = vpop.f32.mrf.mxu0
  %v194 = vadd.f32 %v153, %v193
  %195 = vdwg.mxu0
  %v196 = vmax.f32 %v173, 0.0
  %v197 = vmax.f32 %v176, 0.0
  %v198 = vmax.f32 %v179, 0.0
  %v199 = vmax.f32 %v182, 0.0
  %v200 = vmax.f32 %v185, 0.0
  %v201 = vmax.f32 %v188, 0.0
  %v202 = vmax.f32 %v191, 0.0
  %v203 = vmax.f32 %v194, 0.0
  %v204 = vld [vmem:[%s6] sm:$0xff]
  %v205 = vld [vmem:[%s6 + $0x8] sm:$0xff]
  %v206 = vld [vmem:[%s6 + $0x10] sm:$0xff]
  %v207 = vld [vmem:[%s6 + $0x18] sm:$0xff]
  %v208 = vld [vmem:[%s6 + $0x20] sm:$0xff]
  %v209 = vld [vmem:[%s6 + $0x28] sm:$0xff]
  %v210 = vld [vmem:[%s6 + $0x30] sm:$0xff]
  %v211 = vld [vmem:[%s6 + $0x38] sm:$0xff]
  %v212 = vld [vmem:[%s6 + $0x40] sm:$0xff]
  %v213 = vld [vmem:[%s6 + $0x48] sm:$0xff]
  %v214 = vld [vmem:[%s6 + $0x50] sm:$0xff]
  %v215 = vld [vmem:[%s6 + $0x58] sm:$0xff]
  %v216 = vld [vmem:[%s6 + $0x60] sm:$0xff]
  %v217 = vld [vmem:[%s6 + $0x68] sm:$0xff]
  %v218 = vld [vmem:[%s6 + $0x70] sm:$0xff]
  %v219 = vld [vmem:[%s6 + $0x78] sm:$0xff]
  %v220 = vld [vmem:[%s7] sm:$0x1]
  %v222 = vperm.slane %v220, 0
  %224 = vmatpush.msra.mxu0 %v219
  %225 = vmatpush.msra.mxu0 %v218
  %226 = vmatpush.msra.mxu0 %v217
  %227 = vmatpush.msra.mxu0 %v216
  %228 = vmatpush.msra.mxu0 %v215
  %229 = vmatpush.msra.mxu0 %v214
  %230 = vmatpush.msra.mxu0 %v213
  %231 = vmatpush.msra.mxu0 %v212
  %232 = vmatpush.msra.mxu0 %v211
  %233 = vmatpush.msra.mxu0 %v210
  %234 = vmatpush.msra.mxu0 %v209
  %235 = vmatpush.msra.mxu0 %v208
  %236 = vmatpush.msra.mxu0 %v207
  %237 = vmatpush.msra.mxu0 %v206
  %238 = vmatpush.msra.mxu0 %v205
  %239 = vmatpush.msra.mxu0 %v204
  %240 = vmatmul.f32.gmra.mxu0 %v196
  %v241 = vpop.f32.mrf.mxu0
  %v242 = vadd.f32 %v222, %v241
  %243 = vmatmul.f32.gmra.mxu0 %v197
  %v244 = vpop.f32.mrf.mxu0
  %v245 = vadd.f32 %v222, %v244
  %246 = vmatmul.f32.gmra.mxu0 %v198
  %v247 = vpop.f32.mrf.mxu0
  %v248 = vadd.f32 %v222, %v247
  %249 = vmatmul.f32.gmra.mxu0 %v199
  %v250 = vpop.f32.mrf.mxu0
  %v251 = vadd.f32 %v222, %v250
  %252 = vmatmul.f32.gmra.mxu0 %v200
  %v253 = vpop.f32.mrf.mxu0
  %v254 = vadd.f32 %v222, %v253
  %255 = vmatmul.f32.gmra.mxu0 %v201
  %v256 = vpop.f32.mrf.mxu0
  %v257 = vadd.f32 %v222, %v256
  %258 = vmatmul.f32.gmra.mxu0 %v202
  %v259 = vpop.f32.mrf.mxu0
  %v260 = vadd.f32 %v222, %v259
  %261 = vmatmul.f32.gmra.mxu0 %v203
  %v262 = vpop.f32.mrf.mxu0
  %v263 = vadd.f32 %v222, %v262
  %264 = vdwg.mxu0
  %v265 = vmax.f32 %v242, 0.0
  %v266 = vmax.f32 %v245, 0.0
  %v267 = vmax.f32 %v248, 0.0
  %v268 = vmax.f32 %v251, 0.0
  %v269 = vmax.f32 %v254, 0.0
  %v270 = vmax.f32 %v257, 0.0
  %v271 = vmax.f32 %v260, 0.0
  %v272 = vmax.f32 %v263, 0.0
  %v273 = vld [vmem:[%s8] sm:$0xff]
  %v274 = vld [vmem:[%s8 + $0x8] sm:$0xff]
  %v275 = vld [vmem:[%s8 + $0x10] sm:$0xff]
  %v276 = vld [vmem:[%s8 + $0x18] sm:$0xff]
  %v277 = vld [vmem:[%s8 + $0x20] sm:$0xff]
  %v278 = vld [vmem:[%s8 + $0x28] sm:$0xff]
  %v279 = vld [vmem:[%s8 + $0x30] sm:$0xff]
  %v280 = vld [vmem:[%s8 + $0x38] sm:$0xff]
  %v281 = vld [vmem:[%s8 + $0x40] sm:$0xff]
  %v282 = vld [vmem:[%s8 + $0x48] sm:$0xff]
  %v283 = vld [vmem:[%s8 + $0x50] sm:$0xff]
  %v284 = vld [vmem:[%s8 + $0x58] sm:$0xff]
  %v285 = vld [vmem:[%s8 + $0x60] sm:$0xff]
  %v286 = vld [vmem:[%s8 + $0x68] sm:$0xff]
  %v287 = vld [vmem:[%s8 + $0x70] sm:$0xff]
  %v288 = vld [vmem:[%s8 + $0x78] sm:$0xff]
  %v289 = vld [vmem:[%s9] sm:$0x1]
  %v291 = vperm.slane %v289, 0
  %293 = vmatpush.msra.mxu0 %v288
  %294 = vmatpush.msra.mxu0 %v287
  %295 = vmatpush.msra.mxu0 %v286
  %296 = vmatpush.msra.mxu0 %v285
  %297 = vmatpush.msra.mxu0 %v284
  %298 = vmatpush.msra.mxu0 %v283
  %299 = vmatpush.msra.mxu0 %v282
  %300 = vmatpush.msra.mxu0 %v281
  %301 = vmatpush.msra.mxu0 %v280
  %302 = vmatpush.msra.mxu0 %v279
  %303 = vmatpush.msra.mxu0 %v278
  %304 = vmatpush.msra.mxu0 %v277
  %305 = vmatpush.msra.mxu0 %v276
  %306 = vmatpush.msra.mxu0 %v275
  %307 = vmatpush.msra.mxu0 %v274
  %308 = vmatpush.msra.mxu0 %v273
  %309 = vmatmul.f32.gmra.mxu0 %v265
  %v310 = vpop.f32.mrf.mxu0
  %v311 = vadd.f32 %v291, %v310
  %312 = vmatmul.f32.gmra.mxu0 %v266
  %v313 = vpop.f32.mrf.mxu0
  %v314 = vadd.f32 %v291, %v313
  %315 = vmatmul.f32.gmra.mxu0 %v267
  %v316 = vpop.f32.mrf.mxu0
  %v317 = vadd.f32 %v291, %v316
  %318 = vmatmul.f32.gmra.mxu0 %v268
  %v319 = vpop.f32.mrf.mxu0
  %v320 = vadd.f32 %v291, %v319
  %321 = vmatmul.f32.gmra.mxu0 %v269
  %v322 = vpop.f32.mrf.mxu0
  %v323 = vadd.f32 %v291, %v322
  %324 = vmatmul.f32.gmra.mxu0 %v270
  %v325 = vpop.f32.mrf.mxu0
  %v326 = vadd.f32 %v291, %v325
  %327 = vmatmul.f32.gmra.mxu0 %v271
  %v328 = vpop.f32.mrf.mxu0
  %v329 = vadd.f32 %v291, %v328
  %330 = vmatmul.f32.gmra.mxu0 %v272
  %v331 = vpop.f32.mrf.mxu0
  %v332 = vadd.f32 %v291, %v331
  %333 = vdwg.mxu0
  %334 = vst [vmem:[%s17] sm:$0xff] %v311
  %335 = vst [vmem:[%s17 + $0x8] sm:$0xff] %v314
  %336 = vst [vmem:[%s17 + $0x10] sm:$0xff] %v317
  %337 = vst [vmem:[%s17 + $0x18] sm:$0xff] %v320
  %338 = vst [vmem:[%s17 + $0x20] sm:$0xff] %v323
  %339 = vst [vmem:[%s17 + $0x28] sm:$0xff] %v326
  %340 = vst [vmem:[%s17 + $0x30] sm:$0xff] %v329
  %341 = vst [vmem:[%s17 + $0x38] sm:$0xff] %v332
  %v342 = vld [vmem:[%s10] sm:$0xff]
  %v343 = vld [vmem:[%s10 + $0x8] sm:$0xff]
  %v344 = vld [vmem:[%s10 + $0x10] sm:$0xff]
  %v345 = vld [vmem:[%s10 + $0x18] sm:$0xff]
  %v346 = vld [vmem:[%s10 + $0x20] sm:$0xff]
  %v347 = vld [vmem:[%s10 + $0x28] sm:$0xff]
  %v348 = vld [vmem:[%s10 + $0x30] sm:$0xff]
  %v349 = vld [vmem:[%s10 + $0x38] sm:$0xff]
  %v350 = vld [vmem:[%s10 + $0x40] sm:$0xff]
  %v351 = vld [vmem:[%s10 + $0x48] sm:$0xff]
  %v352 = vld [vmem:[%s10 + $0x50] sm:$0xff]
  %v353 = vld [vmem:[%s10 + $0x58] sm:$0xff]
  %v354 = vld [vmem:[%s10 + $0x60] sm:$0xff]
  %v355 = vld [vmem:[%s10 + $0x68] sm:$0xff]
  %v356 = vld [vmem:[%s10 + $0x70] sm:$0xff]
  %v357 = vld [vmem:[%s10 + $0x78] sm:$0xff]
  %v358 = vld [vmem:[%s1] sm:$0xff]
  %v359 = vld [vmem:[%s1 + $0x8] sm:$0xff]
  %v360 = vld [vmem:[%s1 + $0x10] sm:$0xff]
  %v361 = vld [vmem:[%s1 + $0x18] sm:$0xff]
  %v362 = vld [vmem:[%s1 + $0x20] sm:$0xff]
  %v363 = vld [vmem:[%s1 + $0x28] sm:$0xff]
  %v364 = vld [vmem:[%s1 + $0x30] sm:$0xff]
  %v365 = vld [vmem:[%s1 + $0x38] sm:$0xff]
  %v366 = vld [vmem:[%s11] sm:$0xff]
  %v367 = vld [vmem:[%s11 + $0x8] sm:$0xff]
  %v368 = vld [vmem:[%s11 + $0x10] sm:$0xff]
  %v369 = vld [vmem:[%s11 + $0x18] sm:$0xff]
  %v370 = vld [vmem:[%s11 + $0x20] sm:$0xff]
  %v371 = vld [vmem:[%s11 + $0x28] sm:$0xff]
  %v372 = vld [vmem:[%s11 + $0x30] sm:$0xff]
  %v373 = vld [vmem:[%s11 + $0x38] sm:$0xff]
  %v374 = vld [vmem:[%s11 + $0x40] sm:$0xff]
  %v375 = vld [vmem:[%s11 + $0x48] sm:$0xff]
  %v376 = vld [vmem:[%s11 + $0x50] sm:$0xff]
  %v377 = vld [vmem:[%s11 + $0x58] sm:$0xff]
  %v378 = vld [vmem:[%s11 + $0x60] sm:$0xff]
  %v379 = vld [vmem:[%s11 + $0x68] sm:$0xff]
  %v380 = vld [vmem:[%s11 + $0x70] sm:$0xff]
  %v381 = vld [vmem:[%s11 + $0x78] sm:$0xff]
  %382 = vmatpush.msra.mxu0 %v381
  %383 = vmatpush.msra.mxu0 %v380
  %384 = vmatpush.msra.mxu0 %v379
  %385 = vmatpush.msra.mxu0 %v378
  %386 = vmatpush.msra.mxu0 %v377
  %387 = vmatpush.msra.mxu0 %v376
  %388 = vmatpush.msra.mxu0 %v375
  %389 = vmatpush.msra.mxu0 %v374
  %390 = vmatpush.msra.mxu0 %v373
  %391 = vmatpush.msra.mxu0 %v372
  %392 = vmatpush.msra.mxu0 %v371
  %393 = vmatpush.msra.mxu0 %v370
  %394 = vmatpush.msra.mxu0 %v369
  %395 = vmatpush.msra.mxu0 %v368
  %396 = vmatpush.msra.mxu0 %v367
  %397 = vmatpush.msra.mxu0 %v366
  %398 = vmatmul.f32.gmra.mxu0 %v358
  %v399 = vpop.f32.mrf.mxu0
  %v400 = vadd.f32 0.0, %v399
  %401 = vmatmul.f32.gmra.mxu0 %v359
  %v402 = vpop.f32.mrf.mxu0
  %v403 = vadd.f32 0.0, %v402
  %404 = vmatmul.f32.gmra.mxu0 %v360
  %v405 = vpop.f32.mrf.mxu0
  %v406 = vadd.f32 0.0, %v405
  %407 = vmatmul.f32.gmra.mxu0 %v361
  %v408 = vpop.f32.mrf.mxu0
  %v409 = vadd.f32 0.0, %v408
  %410 = vmatmul.f32.gmra.mxu0 %v362
  %v411 = vpop.f32.mrf.mxu0
  %v412 = vadd.f32 0.0, %v411
  %413 = vmatmul.f32.gmra.mxu0 %v363
  %v414 = vpop.f32.mrf.mxu0
  %v415 = vadd.f32 0.0, %v414
  %416 = vmatmul.f32.gmra.mxu0 %v364
  %v417 = vpop.f32.mrf.mxu0
  %v418 = vadd.f32 0.0, %v417
  %419 = vmatmul.f32.gmra.mxu0 %v365
  %v420 = vpop.f32.mrf.mxu0
  %v421 = vadd.f32 0.0, %v420
  %422 = vdwg.mxu0
  %423 = vmatpush.msra.mxu0 %v357
  %424 = vmatpush.msra.mxu0 %v356
  %425 = vmatpush.msra.mxu0 %v355
  %426 = vmatpush.msra.mxu0 %v354
  %427 = vmatpush.msra.mxu0 %v353
  %428 = vmatpush.msra.mxu0 %v352
  %429 = vmatpush.msra.mxu0 %v351
  %430 = vmatpush.msra.mxu0 %v350
  %431 = vmatpush.msra.mxu0 %v349
  %432 = vmatpush.msra.mxu0 %v348
  %433 = vmatpush.msra.mxu0 %v347
  %434 = vmatpush.msra.mxu0 %v346
  %435 = vmatpush.msra.mxu0 %v345
  %436 = vmatpush.msra.mxu0 %v344
  %437 = vmatpush.msra.mxu0 %v343
  %438 = vmatpush.msra.mxu0 %v342
  %439 = vmatmul.f32.gmra.mxu0 %v196
  %v440 = vpop.f32.mrf.mxu0
  %v441 = vadd.f32 %v400, %v440
  %442 = vmatmul.f32.gmra.mxu0 %v197
  %v443 = vpop.f32.mrf.mxu0
  %v444 = vadd.f32 %v403, %v443
  %445 = vmatmul.f32.gmra.mxu0 %v198
  %v446 = vpop.f32.mrf.mxu0
  %v447 = vadd.f32 %v406, %v446
  %448 = vmatmul.f32.gmra.mxu0 %v199
  %v449 = vpop.f32.mrf.mxu0
  %v450 = vadd.f32 %v409, %v449
  %451 = vmatmul.f32.gmra.mxu0 %v200
  %v452 = vpop.f32.mrf.mxu0
  %v453 = vadd.f32 %v412, %v452
  %454 = vmatmul.f32.gmra.mxu0 %v201
  %v455 = vpop.f32.mrf.mxu0
  %v456 = vadd.f32 %v415, %v455
  %457 = vmatmul.f32.gmra.mxu0 %v202
  %v458 = vpop.f32.mrf.mxu0
  %v459 = vadd.f32 %v418, %v458
  %460 = vmatmul.f32.gmra.mxu0 %v203
  %v461 = vpop.f32.mrf.mxu0
  %v462 = vadd.f32 %v421, %v461
  %463 = vdwg.mxu0
  %v464 = vld [vmem:[%s12] sm:$0x1]
  %v466 = vperm.slane %v464, 0
  %v468 = vadd.f32 %v441, %v466
  %v469 = vadd.f32 %v444, %v466
  %v470 = vadd.f32 %v447, %v466
  %v471 = vadd.f32 %v450, %v466
  %v472 = vadd.f32 %v453, %v466
  %v473 = vadd.f32 %v456, %v466
  %v474 = vadd.f32 %v459, %v466
  %v475 = vadd.f32 %v462, %v466
  %v476 = vmax.f32 %v468, 0.0
  %v477 = vmax.f32 %v469, 0.0
  %v478 = vmax.f32 %v470, 0.0
  %v479 = vmax.f32 %v471, 0.0
  %v480 = vmax.f32 %v472, 0.0
  %v481 = vmax.f32 %v473, 0.0
  %v482 = vmax.f32 %v474, 0.0
  %v483 = vmax.f32 %v475, 0.0
  %v484 = vld [vmem:[%s13] sm:$0xff]
  %v485 = vld [vmem:[%s13 + $0x8] sm:$0xff]
  %v486 = vld [vmem:[%s13 + $0x10] sm:$0xff]
  %v487 = vld [vmem:[%s13 + $0x18] sm:$0xff]
  %v488 = vld [vmem:[%s13 + $0x20] sm:$0xff]
  %v489 = vld [vmem:[%s13 + $0x28] sm:$0xff]
  %v490 = vld [vmem:[%s13 + $0x30] sm:$0xff]
  %v491 = vld [vmem:[%s13 + $0x38] sm:$0xff]
  %v492 = vld [vmem:[%s13 + $0x40] sm:$0xff]
  %v493 = vld [vmem:[%s13 + $0x48] sm:$0xff]
  %v494 = vld [vmem:[%s13 + $0x50] sm:$0xff]
  %v495 = vld [vmem:[%s13 + $0x58] sm:$0xff]
  %v496 = vld [vmem:[%s13 + $0x60] sm:$0xff]
  %v497 = vld [vmem:[%s13 + $0x68] sm:$0xff]
  %v498 = vld [vmem:[%s13 + $0x70] sm:$0xff]
  %v499 = vld [vmem:[%s13 + $0x78] sm:$0xff]
  %v500 = vld [vmem:[%s14] sm:$0x1]
  %v502 = vperm.slane %v500, 0
  %504 = vmatpush.msra.mxu0 %v499
  %505 = vmatpush.msra.mxu0 %v498
  %506 = vmatpush.msra.mxu0 %v497
  %507 = vmatpush.msra.mxu0 %v496
  %508 = vmatpush.msra.mxu0 %v495
  %509 = vmatpush.msra.mxu0 %v494
  %510 = vmatpush.msra.mxu0 %v493
  %511 = vmatpush.msra.mxu0 %v492
  %512 = vmatpush.msra.mxu0 %v491
  %513 = vmatpush.msra.mxu0 %v490
  %514 = vmatpush.msra.mxu0 %v489
  %515 = vmatpush.msra.mxu0 %v488
  %516 = vmatpush.msra.mxu0 %v487
  %517 = vmatpush.msra.mxu0 %v486
  %518 = vmatpush.msra.mxu0 %v485
  %519 = vmatpush.msra.mxu0 %v484
  %520 = vmatmul.f32.gmra.mxu0 %v476
  %v521 = vpop.f32.mrf.mxu0
  %v522 = vadd.f32 %v502, %v521
  %523 = vmatmul.f32.gmra.mxu0 %v477
  %v524 = vpop.f32.mrf.mxu0
  %v525 = vadd.f32 %v502, %v524
  %526 = vmatmul.f32.gmra.mxu0 %v478
  %v527 = vpop.f32.mrf.mxu0
  %v528 = vadd.f32 %v502, %v527
  %529 = vmatmul.f32.gmra.mxu0 %v479
  %v530 = vpop.f32.mrf.mxu0
  %v531 = vadd.f32 %v502, %v530
  %532 = vmatmul.f32.gmra.mxu0 %v480
  %v533 = vpop.f32.mrf.mxu0
  %v534 = vadd.f32 %v502, %v533
  %535 = vmatmul.f32.gmra.mxu0 %v481
  %v536 = vpop.f32.mrf.mxu0
  %v537 = vadd.f32 %v502, %v536
  %538 = vmatmul.f32.gmra.mxu0 %v482
  %v539 = vpop.f32.mrf.mxu0
  %v540 = vadd.f32 %v502, %v539
  %541 = vmatmul.f32.gmra.mxu0 %v483
  %v542 = vpop.f32.mrf.mxu0
  %v543 = vadd.f32 %v502, %v542
  %544 = vdwg.mxu0
  %v545 = vmax.f32 %v522, 0.0
  %v546 = vmax.f32 %v525, 0.0
  %v547 = vmax.f32 %v528, 0.0
  %v548 = vmax.f32 %v531, 0.0
  %v549 = vmax.f32 %v534, 0.0
  %v550 = vmax.f32 %v537, 0.0
  %v551 = vmax.f32 %v540, 0.0
  %v552 = vmax.f32 %v543, 0.0
  %v553 = vld [vmem:[%s15] sm:$0xff]
  %v554 = vld [vmem:[%s15 + $0x8] sm:$0xff]
  %v555 = vld [vmem:[%s15 + $0x10] sm:$0xff]
  %v556 = vld [vmem:[%s15 + $0x18] sm:$0xff]
  %v557 = vld [vmem:[%s15 + $0x20] sm:$0xff]
  %v558 = vld [vmem:[%s15 + $0x28] sm:$0xff]
  %v559 = vld [vmem:[%s15 + $0x30] sm:$0xff]
  %v560 = vld [vmem:[%s15 + $0x38] sm:$0xff]
  %v561 = vld [vmem:[%s15 + $0x40] sm:$0xff]
  %v562 = vld [vmem:[%s15 + $0x48] sm:$0xff]
  %v563 = vld [vmem:[%s15 + $0x50] sm:$0xff]
  %v564 = vld [vmem:[%s15 + $0x58] sm:$0xff]
  %v565 = vld [vmem:[%s15 + $0x60] sm:$0xff]
  %v566 = vld [vmem:[%s15 + $0x68] sm:$0xff]
  %v567 = vld [vmem:[%s15 + $0x70] sm:$0xff]
  %v568 = vld [vmem:[%s15 + $0x78] sm:$0xff]
  %v569 = vld [vmem:[%s16] sm:$0x1]
  %v571 = vperm.slane %v569, 0
  %573 = vmatpush.msra.mxu0 %v568
  %574 = vmatpush.msra.mxu0 %v567
  %575 = vmatpush.msra.mxu0 %v566
  %576 = vmatpush.msra.mxu0 %v565
  %577 = vmatpush.msra.mxu0 %v564
  %578 = vmatpush.msra.mxu0 %v563
  %579 = vmatpush.msra.mxu0 %v562
  %580 = vmatpush.msra.mxu0 %v561
  %581 = vmatpush.msra.mxu0 %v560
  %582 = vmatpush.msra.mxu0 %v559
  %583 = vmatpush.msra.mxu0 %v558
  %584 = vmatpush.msra.mxu0 %v557
  %585 = vmatpush.msra.mxu0 %v556
  %586 = vmatpush.msra.mxu0 %v555
  %587 = vmatpush.msra.mxu0 %v554
  %588 = vmatpush.msra.mxu0 %v553
  %589 = vmatmul.f32.gmra.mxu0 %v545
  %v590 = vpop.f32.mrf.mxu0
  %v591 = vadd.f32 %v571, %v590
  %592 = vmatmul.f32.gmra.mxu0 %v546
  %v593 = vpop.f32.mrf.mxu0
  %v594 = vadd.f32 %v571, %v593
  %595 = vmatmul.f32.gmra.mxu0 %v547
  %v596 = vpop.f32.mrf.mxu0
  %v597 = vadd.f32 %v571, %v596
  %598 = vmatmul.f32.gmra.mxu0 %v548
  %v599 = vpop.f32.mrf.mxu0
  %v600 = vadd.f32 %v571, %v599
  %601 = vmatmul.f32.gmra.mxu0 %v549
  %v602 = vpop.f32.mrf.mxu0
  %v603 = vadd.f32 %v571, %v602
  %604 = vmatmul.f32.gmra.mxu0 %v550
  %v605 = vpop.f32.mrf.mxu0
  %v606 = vadd.f32 %v571, %v605
  %607 = vmatmul.f32.gmra.mxu0 %v551
  %v608 = vpop.f32.mrf.mxu0
  %v609 = vadd.f32 %v571, %v608
  %610 = vmatmul.f32.gmra.mxu0 %v552
  %v611 = vpop.f32.mrf.mxu0
  %v612 = vadd.f32 %v571, %v611
  %613 = vdwg.mxu0
  %614 = vst [vmem:[%s18] sm:$0xff] %v591
  %615 = vst [vmem:[%s18 + $0x8] sm:$0xff] %v594
  %616 = vst [vmem:[%s18 + $0x10] sm:$0xff] %v597
  %617 = vst [vmem:[%s18 + $0x18] sm:$0xff] %v600
  %618 = vst [vmem:[%s18 + $0x20] sm:$0xff] %v603
  %619 = vst [vmem:[%s18 + $0x28] sm:$0xff] %v606
  %620 = vst [vmem:[%s18 + $0x30] sm:$0xff] %v609
  %621 = vst [vmem:[%s18 + $0x38] sm:$0xff] %v612
  // Predicated region
  $region70: #{nsvf_forward.1} parent=0 // pred_check
    _
  $region71: #{nsvf_forward.1} parent=0 // pred_check_branch
    %623 = sbr.rel (0) target = $region73
  $region72: #{nsvf_forward.1} parent=0 // pred_region
    _
  $region73: #{nsvf_forward.1} parent=0 // pred_fallthru
    _
  // Predicated region
  $region74: #{nsvf_forward.1} parent=0 // pred_check
    _
  $region75: #{nsvf_forward.1} parent=0 // pred_check_branch
    %625 = sbr.rel (0) target = $region77
  $region76: #{nsvf_forward.1} parent=0 // pred_region
    _
  $region77: #{nsvf_forward.1} parent=0 // pred_fallthru
    _
  // Predicated region
  $region78: #{nsvf_forward.1} parent=0 // pred_check
    _
  $region79: #{nsvf_forward.1} parent=0 // pred_check_branch
    %627 = sbr.rel (0) target = $region81
  $region80: #{nsvf_forward.1} parent=0 // pred_region
    _
  $region81: #{nsvf_forward.1} parent=0 // pred_fallthru
    _
  // Predicated region
  $region82: #{nsvf_forward.1} parent=0 // pred_check
    _
  $region83: #{nsvf_forward.1} parent=0 // pred_check_branch
    %629 = sbr.rel (0) target = $region85
  $region84: #{nsvf_forward.1} parent=0 // pred_region
    _
  $region85: #{nsvf_forward.1} parent=0 // pred_fallthru
    _

</llo_original>
